<compile_context>
chip_gen: v6e
topology: v6e:2x2x1
jax: 0.10.0
libtpu: 0.0.40
codegen_flags: <defaults>
</compile_context>

<pallas_src>
import functools

import jax
import jax.numpy as jnp
from jax.experimental import pallas as pl
from jax.experimental.pallas import tpu as pltpu


# ---------------------------------------------------------------------------
# Shared math (used by the Pallas kernel AND by a pure-jnp replica check).
# Everything is transposed ("feature-major"): h^T is [dim, RN].
#   agg^T = h^T @ (A+I)^T
#   h^T   = relu(W1'^T @ agg^T + b1'^T)      (Linear1 + inner BN folded)
#   h^T   = relu(W2'^T @ h^T   + b2'^T)      (Linear2 + outer bns[l] folded)
#   acc^T += Wf_l^T @ h_l^T                  (collapsed per-layer readouts)
#   out   = pool @ acc  + sum_l bf_l  ;  log_softmax(out)
# ---------------------------------------------------------------------------
def _forward_math(abd_t, h0, pool, w_list, b_list, wf_list, bf_sum):
    cdt = jnp.bfloat16
    num_layers = len(w_list) // 2
    h = h0                                                           # [dim, RN] bf16
    acc = jnp.dot(wf_list[0], h, preferred_element_type=jnp.float32)  # [C, RN] f32
    for l in range(num_layers):
        agg = jnp.dot(h, abd_t, preferred_element_type=jnp.float32)   # (A+I)@h, transposed
        z = jnp.dot(w_list[2 * l], agg.astype(cdt),
                    preferred_element_type=jnp.float32) + b_list[2 * l]
        z = jnp.maximum(z, 0.0).astype(cdt)                            # Lin1 + BN1 + ReLU
        z = jnp.dot(w_list[2 * l + 1], z,
                    preferred_element_type=jnp.float32) + b_list[2 * l + 1]
        h = jnp.maximum(z, 0.0).astype(cdt)                            # Lin2 + bns[l] + ReLU
        acc = acc + jnp.dot(wf_list[l + 1], h,
                            preferred_element_type=jnp.float32)
    # single pooled readout: out[g, c] = sum_n pool[g, n] * acc[c, n]  (+ summed fc biases)
    out = jax.lax.dot_general(pool, acc.astype(cdt),
                              dimension_numbers=(((1,), (1,)), ((), ())),
                              preferred_element_type=jnp.float32) + bf_sum
    # log_softmax over classes (F.dropout on the fc outputs is identity in eval)
    m = jnp.max(out, axis=-1, keepdims=True)
    lse = m + jnp.log(jnp.sum(jnp.exp(out - m), axis=-1, keepdims=True))
    return out - lse


def _make_fused_kernel(num_layers):
    def kernel(abd_t_ref, x0t_ref, pool_ref, w_ref, b_ref, wf_ref, bfsum_ref,
               out_ref):
        w_list = [w_ref[i] for i in range(2 * num_layers)]            # [dim, dim] each
        b_list = [b_ref[:, i:i + 1] for i in range(2 * num_layers)]   # [dim, 1]  each
        wf_list = [wf_ref[i] for i in range(num_layers + 1)]          # [C, dim]  each
        log_probs = _forward_math(abd_t_ref[...], x0t_ref[...], pool_ref[...],
                                  w_list, b_list, wf_list, bfsum_ref[...])
        out_ref[...] = log_probs.astype(out_ref.dtype)
    return kernel


def drop_gin_fused(static, x0t):
    abd_t, pool = static["abd_t"], static["pool"]
    w_stack, b_stack = static["w_stack"], static["b_stack"]
    wf_stack, bf_sum = static["wf_stack"], static["bf_sum"]
    num_layers = w_stack.shape[0] // 2
    dim, RN = x0t.shape
    G = pool.shape[0]
    C = wf_stack.shape[1]

    args = (abd_t, x0t, pool, w_stack, b_stack, wf_stack, bf_sum)
    flops = (num_layers * 2 * dim * RN * RN            # (A+I) aggregations
             + num_layers * 2 * 2 * dim * dim * RN     # two folded linears per layer
             + (num_layers + 1) * 2 * C * dim * RN     # collapsed readout accumulation
             + 2 * G * RN * C)                         # final pooling matmul
    bytes_accessed = sum(int(a.size) * a.dtype.itemsize for a in args) + G * C * 4

    vmem = pl.BlockSpec(memory_space=pltpu.MemorySpace.VMEM)
    # NOTE: no grid -- at RN=128 the whole working set (~50 KB) is VMEM-resident
    # on every TPU generation and RN=128 exactly fills the v5e MXU.  For much
    # larger RN the dense [RN, RN] block-diagonal must be replaced by a per-run
    # batched (A+I) with a grid over runs (and 'parallel' semantics to use both
    # v7x TensorCores); on v6e/v7x two drop seeds could be batched to RN=256 to
    # fill the 256-wide MXU.
    return pl.pallas_call(
        _make_fused_kernel(num_layers),
        out_shape=jax.ShapeDtypeStruct((G, C), jnp.float32),
        in_specs=[vmem] * len(args),
        out_specs=vmem,
        cost_estimate=pl.CostEstimate(flops=int(flops),
                                      transcendentals=int(G * (C + 1)),
                                      bytes_accessed=int(bytes_accessed)),
    )(*args)


# ---------------------------------------------------------------------------
# Parameter construction (deterministic, synthetic) + static / per-call prep.
# ---------------------------------------------------------------------------
def fold_bn(gamma, beta, mean, var, eps=1e-5):
    scale = gamma / jnp.sqrt(var + eps)
    shift = beta - mean * scale
    return scale, shift


def fold_conv_params(conv):
    """Fold eval-mode BN into the linear weights (algebraically exact in f32)."""
    s1, t1 = fold_bn(*conv["bn1"])          # inner BN of the GIN MLP
    s2, t2 = fold_bn(*conv["bn2"])          # outer bns[l]
    w1 = conv["w1"] * s1[None, :]
    b1 = conv["b1"] * s1[None, :] + t1[None, :]
    w2 = conv["w2"] * s2[None, :]
    b2 = conv["b2"] * s2[None, :] + t2[None, :]
    return (w1, b1, w2, b2)


def make_params(key, num_features, dim, num_classes, num_layers):
    convs, fcs = [], []
    for l in range(num_layers):
        fin = num_features if l == 0 else dim
        key, *ks = jax.random.split(key, 11)
        w1 = 0.1 * jax.random.normal(ks[0], (fin, dim), jnp.float32)
        b1 = 0.1 * jax.random.normal(ks[1], (1, dim), jnp.float32)
        g1 = 0.5 + jax.random.uniform(ks[2], (dim,), jnp.float32)
        be1 = 0.1 * jax.random.normal(ks[3], (dim,), jnp.float32)
        m1 = 0.1 * jax.random.normal(ks[4], (dim,), jnp.float32)
        v1 = 0.5 + jax.random.uniform(ks[5], (dim,), jnp.float32)
        w2 = 0.1 * jax.random.normal(ks[6], (dim, dim), jnp.float32)
        b2 = 0.1 * jax.random.normal(ks[7], (1, dim), jnp.float32)
        g2 = 0.5 + jax.random.uniform(ks[8], (dim,), jnp.float32)
        be2 = 0.1 * jax.random.normal(ks[9], (dim,), jnp.float32)
        key, k1, k2 = jax.random.split(key, 3)
        m2 = 0.1 * jax.random.normal(k1, (dim,), jnp.float32)
        v2 = 0.5 + jax.random.uniform(k2, (dim,), jnp.float32)
        convs.append(dict(w1=w1, b1=b1, bn1=(g1, be1, m1, v1),
                          w2=w2, b2=b2, bn2=(g2, be2, m2, v2)))
    for l in range(num_layers + 1):
        fin = num_features if l == 0 else dim
        key, k1, k2 = jax.random.split(key, 3)
        wf = 0.1 * jax.random.normal(k1, (fin, num_classes), jnp.float32)
        bf = 0.1 * jax.random.normal(k2, (1, num_classes), jnp.float32)
        fcs.append((wf, bf))
    return dict(convs=convs, fcs=fcs)


def build_static(params, adj, batch_one_hot, num_runs):
    """One-time prep: block-diag (A+I)^T, combined pooling matrix, eval-BN
    folding and slab packing.  Depends only on params/adj/batch (NOT on the
    per-call drop key), so it is hoisted out of the jitted forward path."""
    convs, fcs = params["convs"], params["fcs"]
    dim = convs[0]["w2"].shape[0]
    F0 = fcs[0][0].shape[0]
    C = fcs[0][0].shape[1]
    N = adj.shape[0]
    R = num_runs
    RN = R * N
    assert F0 <= dim, "packing scheme pads num_features up to the hidden dim"

    # (A + I) replicated block-diagonally over runs, TRANSPOSED because the
    # kernel works on h^T:  ((A+I) @ h)^T == h^T @ (A+I)^T.   (eps = 0.)
    abd = (jnp.kron(jnp.eye(R, dtype=jnp.float32), adj)
           + jnp.eye(RN, dtype=jnp.float32))
    abd_t = abd.T.astype(jnp.bfloat16)                              # [RN, RN]

    # mean over runs + global_add_pool in one matrix (1/R folded in; exact in bf16)
    pool = (jnp.tile(batch_one_hot, (1, R)) / jnp.float32(R)).astype(jnp.bfloat16)

    # Fold BN into the linears, transpose to feature-major, zero-pad the
    # layer-0 input dim (F0 -> dim), pack everything into a few slabs.
    w_list, b_cols = [], []
    for conv in convs:
        w1, b1, w2, b2 = fold_conv_params(conv)        # w: [fin, dim], b: [1, dim]
        w1t = jnp.pad(w1.T, ((0, 0), (0, dim - w1.shape[0])))
        w_list += [w1t, w2.T]
        b_cols += [b1.reshape(dim, 1), b2.reshape(dim, 1)]
    w_stack = jnp.stack(w_list).astype(jnp.bfloat16)                # [2L, dim, dim]
    b_stack = jnp.concatenate(b_cols, axis=1).astype(jnp.float32)   # [dim, 2L]

    wf_list = []
    bf_sum = jnp.zeros((1, C), jnp.float32)
    for wf, bf in fcs:
        wf_list.append(jnp.pad(wf.T, ((0, 0), (0, dim - wf.shape[0]))))
        bf_sum = bf_sum + bf.reshape(1, C)
    wf_stack = jnp.stack(wf_list).astype(jnp.bfloat16)              # [L+1, C, dim]

    return dict(abd_t=abd_t, pool=pool, w_stack=w_stack, b_stack=b_stack,
                wf_stack=wf_stack, bf_sum=bf_sum)


def make_x0t(x, drop_key, num_runs, p, dim):
    """Per-call prep: bernoulli node drop (features zeroed, edges kept), run
    flattening, transpose to feature-major, zero-pad F0 -> dim, cast to bf16."""
    N, F0 = x.shape
    drop = jax.random.bernoulli(drop_key, p=p, shape=(num_runs, N))
    xr = jnp.where(drop[:, :, None], 0.0, x[None, :, :]).astype(jnp.float32)
    xt = xr.reshape(num_runs * N, F0).T                              # [F0, RN]
    x0t = jnp.zeros((dim, num_runs * N), jnp.float32).at[:F0, :].set(xt)
    return x0t.astype(jnp.bfloat16)


def drop_gin_forward(static, x, drop_key, *, num_runs, p):
    """Eval-mode DropGIN forward.  Returns (log_softmax(out), 0)."""
    dim = static["w_stack"].shape[1]
    x0t = make_x0t(x, drop_key, num_runs, p, dim)
    log_probs = drop_gin_fused(static, x0t)
    # TODO(synk): use_aux_loss=True branch not implemented (module default path
    # here is use_aux_loss=False -> aux output is the constant 0).
    return log_probs, 0


# ---------------------------------------------------------------------------
# References for correctness checking.
# ---------------------------------------------------------------------------
def reference_replica(static, x0t):
    """Pure-jnp replica of the EXACT kernel math (bf16 operands, f32 accum).
    Validates the Pallas mechanics (layout, slicing, ref plumbing)."""
    w, b, wf = static["w_stack"], static["b_stack"], static["wf_stack"]
    num_layers = w.shape[0] // 2
    w_list = [w[i] for i in range(2 * num_layers)]
    b_list = [b[:, i:i + 1] for i in range(2 * num_layers)]
    wf_list = [wf[i] for i in range(num_layers + 1)]
    return _forward_math(static["abd_t"], x0t, static["pool"],
                         w_list, b_list, wf_list, static["bf_sum"])


def bn_eval(x, gamma, beta, mean, var, eps=1e-5):
    return (x - mean) / jnp.sqrt(var + eps) * gamma + beta


def reference_unfolded(params, x, adj, batch_one_hot, num_runs, p, drop_key):
    """Direct f32 translation of DropGIN.forward (eval, use_aux_loss=False):
    per-run drop, unfolded BN, per-layer mean->pool->fc readouts.  Validates
    the BN folding, block-diag (A+I) and readout-collapse algebra."""
    N, F0 = x.shape
    R = num_runs
    drop = jax.random.bernoulli(drop_key, p=p, shape=(R, N))
    xr = jnp.where(drop[:, :, None], 0.0, x[None, :, :]).astype(jnp.float32)
    outs = [xr]
    h = xr.reshape(R * N, F0)
    abd = (jnp.kron(jnp.eye(R, dtype=jnp.float32), adj)
           + jnp.eye(R * N, dtype=jnp.float32))
    for conv in params["convs"]:
        agg = abd @ h                              # (1+eps)*x_i + sum_neighbors, eps=0
        z = agg @ conv["w1"] + conv["b1"]
        z = bn_eval(z, *conv["bn1"])
        z = jnp.maximum(z, 0.0)
        z = z @ conv["w2"] + conv["b2"]
        z = bn_eval(z, *conv["bn2"])               # outer bns[l]
        h = jnp.maximum(z, 0.0)
        outs.append(h.reshape(R, N, -1))
    out = None
    for hs, (wf, bf) in zip(outs, params["fcs"]):
        g = hs.mean(axis=0)                        # mean over runs
        g = batch_one_hot @ g                      # global_add_pool
        g = g @ wf + bf                            # fc (+ eval dropout = identity)
        out = g if out is None else out + g
    return jax.nn.log_softmax(out, axis=-1)


if __name__ == "__main__":
    # --- synthetic "dataset" -------------------------------------------------
    num_features = 8
    hidden_dim = 32
    num_classes = 4
    num_layers = 3
    nodes_per_graph = 8
    num_graphs = 2
    N = nodes_per_graph * num_graphs          # 16 nodes total
    gamma = nodes_per_graph                   # mean number of nodes
    num_runs = gamma                          # R = 8  ->  R*N = 128 lanes
    p = 2.0 / (1.0 + gamma)                   # sampling probability

    key = jax.random.PRNGKey(0)
    key, kx, kdrop, kparam = jax.random.split(key, 4)

    # node features
    x = jax.random.normal(kx, (N, num_features), jnp.float32)

    # edge_index: directed ring (both directions) inside each graph
    src, dst = [], []
    for g in range(num_graphs):
        base = g * nodes_per_graph
        for i in range(nodes_per_graph):
            j = (i + 1) % nodes_per_graph
            src += [base + i, base + j]
            dst += [base + j, base + i]
    src = jnp.array(src, jnp.int32)
    dst = jnp.array(dst, jnp.int32)
    # dense adjacency: A[dst, src] += 1  ->  A @ h == neighbor-sum aggregation
    adj = jnp.zeros((N, N), jnp.float32).at[dst, src].add(1.0)

    # batch vector and one-hot pooling matrix [G, N] (global_add_pool)
    batch = jnp.repeat(jnp.arange(num_graphs, dtype=jnp.int32), nodes_per_graph)
    batch_one_hot = jax.nn.one_hot(batch, num_graphs, dtype=jnp.float32).T

    params = make_params(kparam, num_features, hidden_dim, num_classes,
                         num_layers)

    # static prep done ONCE (hoisted out of the per-call / jitted path)
    static = build_static(params, adj, batch_one_hot, num_runs)

    fwd = jax.jit(functools.partial(drop_gin_forward, num_runs=num_runs, p=p))
    log_probs, aux = fwd(static, x, kdrop)
    log_probs = jax.block_until_ready(log_probs)

    assert log_probs.shape == (num_graphs, num_classes)
    assert bool(jnp.all(jnp.isfinite(log_probs)))

    # Tight check: exact pure-jnp replica of the kernel math (same bf16 casts,
    # same folded/packed operands) -> validates the Pallas kernel mechanics.
    x0t = make_x0t(x, kdrop, num_runs, p, hidden_dim)
    replica = reference_replica(static, x0t)
    assert bool(jnp.allclose(log_probs, replica, rtol=1e-3, atol=1e-3)), (
        "kernel does not match its jnp replica")

    # Loose check: faithful unfolded f32 translation of the PyTorch forward
    # (separate BN, per-layer readouts) -> validates the BN-fold / block-diag /
    # readout-collapse algebra; the slack covers the bf16 MXU operands.
    ref = reference_unfolded(params, x, adj, batch_one_hot, num_runs, p, kdrop)
    assert bool(jnp.allclose(log_probs, ref, rtol=1e-1, atol=1e-1)), (
        "kernel does not match the unfolded f32 reference")

    print("KERNEL_OK")
</pallas_src>

<mosaic_0001>
module attributes {stable_mosaic.version = 11 : i64} {
  func.func @kernel(%arg0: memref<128x128xbf16, #tpu.memory_space<vmem>>, %arg1: memref<32x128xbf16, #tpu.memory_space<vmem>>, %arg2: memref<2x128xbf16, #tpu.memory_space<vmem>>, %arg3: memref<6x32x32xbf16, #tpu.memory_space<vmem>>, %arg4: memref<32x6xf32, #tpu.memory_space<vmem>>, %arg5: memref<4x4x32xbf16, #tpu.memory_space<vmem>>, %arg6: memref<1x4xf32, #tpu.memory_space<vmem>>, %arg7: memref<2x4xf32, #tpu.memory_space<vmem>>) attributes {dimension_semantics = [], scalar_prefetch = 0 : i64, scratch_operands = 0 : i64, tpu.core_type = #tpu.core_type<tc>} {
    %c0 = arith.constant 0 : index
    %c0_0 = arith.constant 0 : index
    %c0_1 = arith.constant 0 : index
    %0 = vector.load %arg3[%c0, %c0_0, %c0_1] : memref<6x32x32xbf16, #tpu.memory_space<vmem>>, vector<1x32x32xbf16>
    %1 = vector.shape_cast %0 : vector<1x32x32xbf16> to vector<32x32xbf16>
    %c1 = arith.constant 1 : index
    %c0_2 = arith.constant 0 : index
    %c0_3 = arith.constant 0 : index
    %2 = vector.load %arg3[%c1, %c0_2, %c0_3] : memref<6x32x32xbf16, #tpu.memory_space<vmem>>, vector<1x32x32xbf16>
    %3 = vector.shape_cast %2 : vector<1x32x32xbf16> to vector<32x32xbf16>
    %c2 = arith.constant 2 : index
    %c0_4 = arith.constant 0 : index
    %c0_5 = arith.constant 0 : index
    %4 = vector.load %arg3[%c2, %c0_4, %c0_5] : memref<6x32x32xbf16, #tpu.memory_space<vmem>>, vector<1x32x32xbf16>
    %5 = vector.shape_cast %4 : vector<1x32x32xbf16> to vector<32x32xbf16>
    %c3 = arith.constant 3 : index
    %c0_6 = arith.constant 0 : index
    %c0_7 = arith.constant 0 : index
    %6 = vector.load %arg3[%c3, %c0_6, %c0_7] : memref<6x32x32xbf16, #tpu.memory_space<vmem>>, vector<1x32x32xbf16>
    %7 = vector.shape_cast %6 : vector<1x32x32xbf16> to vector<32x32xbf16>
    %c4 = arith.constant 4 : index
    %c0_8 = arith.constant 0 : index
    %c0_9 = arith.constant 0 : index
    %8 = vector.load %arg3[%c4, %c0_8, %c0_9] : memref<6x32x32xbf16, #tpu.memory_space<vmem>>, vector<1x32x32xbf16>
    %9 = vector.shape_cast %8 : vector<1x32x32xbf16> to vector<32x32xbf16>
    %c5 = arith.constant 5 : index
    %c0_10 = arith.constant 0 : index
    %c0_11 = arith.constant 0 : index
    %10 = vector.load %arg3[%c5, %c0_10, %c0_11] : memref<6x32x32xbf16, #tpu.memory_space<vmem>>, vector<1x32x32xbf16>
    %11 = vector.shape_cast %10 : vector<1x32x32xbf16> to vector<32x32xbf16>
    %c0_12 = arith.constant 0 : index
    %c0_13 = arith.constant 0 : index
    %12 = vector.load %arg4[%c0_12, %c0_13] : memref<32x6xf32, #tpu.memory_space<vmem>>, vector<32x1xf32>
    %c0_14 = arith.constant 0 : index
    %c1_15 = arith.constant 1 : index
    %13 = vector.load %arg4[%c0_14, %c1_15] : memref<32x6xf32, #tpu.memory_space<vmem>>, vector<32x1xf32>
    %c0_16 = arith.constant 0 : index
    %c2_17 = arith.constant 2 : index
    %14 = vector.load %arg4[%c0_16, %c2_17] : memref<32x6xf32, #tpu.memory_space<vmem>>, vector<32x1xf32>
    %c0_18 = arith.constant 0 : index
    %c3_19 = arith.constant 3 : index
    %15 = vector.load %arg4[%c0_18, %c3_19] : memref<32x6xf32, #tpu.memory_space<vmem>>, vector<32x1xf32>
    %c0_20 = arith.constant 0 : index
    %c4_21 = arith.constant 4 : index
    %16 = vector.load %arg4[%c0_20, %c4_21] : memref<32x6xf32, #tpu.memory_space<vmem>>, vector<32x1xf32>
    %c0_22 = arith.constant 0 : index
    %c5_23 = arith.constant 5 : index
    %17 = vector.load %arg4[%c0_22, %c5_23] : memref<32x6xf32, #tpu.memory_space<vmem>>, vector<32x1xf32>
    %c0_24 = arith.constant 0 : index
    %c0_25 = arith.constant 0 : index
    %c0_26 = arith.constant 0 : index
    %18 = vector.load %arg5[%c0_24, %c0_25, %c0_26] : memref<4x4x32xbf16, #tpu.memory_space<vmem>>, vector<1x4x32xbf16>
    %19 = vector.shape_cast %18 : vector<1x4x32xbf16> to vector<4x32xbf16>
    %c1_27 = arith.constant 1 : index
    %c0_28 = arith.constant 0 : index
    %c0_29 = arith.constant 0 : index
    %20 = vector.load %arg5[%c1_27, %c0_28, %c0_29] : memref<4x4x32xbf16, #tpu.memory_space<vmem>>, vector<1x4x32xbf16>
    %21 = vector.shape_cast %20 : vector<1x4x32xbf16> to vector<4x32xbf16>
    %c2_30 = arith.constant 2 : index
    %c0_31 = arith.constant 0 : index
    %c0_32 = arith.constant 0 : index
    %22 = vector.load %arg5[%c2_30, %c0_31, %c0_32] : memref<4x4x32xbf16, #tpu.memory_space<vmem>>, vector<1x4x32xbf16>
    %23 = vector.shape_cast %22 : vector<1x4x32xbf16> to vector<4x32xbf16>
    %c3_33 = arith.constant 3 : index
    %c0_34 = arith.constant 0 : index
    %c0_35 = arith.constant 0 : index
    %24 = vector.load %arg5[%c3_33, %c0_34, %c0_35] : memref<4x4x32xbf16, #tpu.memory_space<vmem>>, vector<1x4x32xbf16>
    %25 = vector.shape_cast %24 : vector<1x4x32xbf16> to vector<4x32xbf16>
    %c0_36 = arith.constant 0 : index
    %c0_37 = arith.constant 0 : index
    %26 = vector.load %arg0[%c0_36, %c0_37] : memref<128x128xbf16, #tpu.memory_space<vmem>>, vector<128x128xbf16>
    %c0_38 = arith.constant 0 : index
    %c0_39 = arith.constant 0 : index
    %27 = vector.load %arg1[%c0_38, %c0_39] : memref<32x128xbf16, #tpu.memory_space<vmem>>, vector<32x128xbf16>
    %c0_40 = arith.constant 0 : index
    %c0_41 = arith.constant 0 : index
    %28 = vector.load %arg2[%c0_40, %c0_41] : memref<2x128xbf16, #tpu.memory_space<vmem>>, vector<2x128xbf16>
    %c0_42 = arith.constant 0 : index
    %c0_43 = arith.constant 0 : index
    %29 = vector.load %arg6[%c0_42, %c0_43] : memref<1x4xf32, #tpu.memory_space<vmem>>, vector<1x4xf32>
    %cst = arith.constant dense<0.000000e+00> : vector<4x128xf32>
    %30 = tpu.matmul %19, %27, %cst {dimension_numbers = #tpu.dot_dimension_numbers<[1], [0], [0], [1], [0, 0, 1, 1], [], []>} : vector<4x32xbf16>, vector<32x128xbf16>, vector<4x128xf32> -> vector<4x128xf32>
    %cst_44 = arith.constant dense<0.000000e+00> : vector<32x128xf32>
    %31 = tpu.matmul %27, %26, %cst_44 {dimension_numbers = #tpu.dot_dimension_numbers<[1], [0], [0], [1], [0, 0, 1, 1], [], []>} : vector<32x128xbf16>, vector<128x128xbf16>, vector<32x128xf32> -> vector<32x128xf32>
    %32 = arith.truncf %31 : vector<32x128xf32> to vector<32x128xbf16>
    %cst_45 = arith.constant dense<0.000000e+00> : vector<32x128xf32>
    %33 = tpu.matmul %1, %32, %cst_45 {dimension_numbers = #tpu.dot_dimension_numbers<[1], [0], [0], [1], [0, 0, 1, 1], [], []>} : vector<32x32xbf16>, vector<32x128xbf16>, vector<32x128xf32> -> vector<32x128xf32>
    %34 = vector.broadcast %12 : vector<32x1xf32> to vector<32x128xf32>
    %35 = arith.addf %33, %34 : vector<32x128xf32>
    %cst_46 = arith.constant 0.000000e+00 : f32
    %36 = vector.broadcast %cst_46 : f32 to vector<32x128xf32>
    %37 = arith.maximumf %35, %36 : vector<32x128xf32>
    %38 = arith.truncf %37 : vector<32x128xf32> to vector<32x128xbf16>
    %cst_47 = arith.constant dense<0.000000e+00> : vector<32x128xf32>
    %39 = tpu.matmul %3, %38, %cst_47 {dimension_numbers = #tpu.dot_dimension_numbers<[1], [0], [0], [1], [0, 0, 1, 1], [], []>} : vector<32x32xbf16>, vector<32x128xbf16>, vector<32x128xf32> -> vector<32x128xf32>
    %40 = vector.broadcast %13 : vector<32x1xf32> to vector<32x128xf32>
    %41 = arith.addf %39, %40 : vector<32x128xf32>
    %cst_48 = arith.constant 0.000000e+00 : f32
    %42 = vector.broadcast %cst_48 : f32 to vector<32x128xf32>
    %43 = arith.maximumf %41, %42 : vector<32x128xf32>
    %44 = arith.truncf %43 : vector<32x128xf32> to vector<32x128xbf16>
    %cst_49 = arith.constant dense<0.000000e+00> : vector<4x128xf32>
    %45 = tpu.matmul %21, %44, %cst_49 {dimension_numbers = #tpu.dot_dimension_numbers<[1], [0], [0], [1], [0, 0, 1, 1], [], []>} : vector<4x32xbf16>, vector<32x128xbf16>, vector<4x128xf32> -> vector<4x128xf32>
    %46 = arith.addf %30, %45 : vector<4x128xf32>
    %cst_50 = arith.constant dense<0.000000e+00> : vector<32x128xf32>
    %47 = tpu.matmul %44, %26, %cst_50 {dimension_numbers = #tpu.dot_dimension_numbers<[1], [0], [0], [1], [0, 0, 1, 1], [], []>} : vector<32x128xbf16>, vector<128x128xbf16>, vector<32x128xf32> -> vector<32x128xf32>
    %48 = arith.truncf %47 : vector<32x128xf32> to vector<32x128xbf16>
    %cst_51 = arith.constant dense<0.000000e+00> : vector<32x128xf32>
    %49 = tpu.matmul %5, %48, %cst_51 {dimension_numbers = #tpu.dot_dimension_numbers<[1], [0], [0], [1], [0, 0, 1, 1], [], []>} : vector<32x32xbf16>, vector<32x128xbf16>, vector<32x128xf32> -> vector<32x128xf32>
    %50 = vector.broadcast %14 : vector<32x1xf32> to vector<32x128xf32>
    %51 = arith.addf %49, %50 : vector<32x128xf32>
    %cst_52 = arith.constant 0.000000e+00 : f32
    %52 = vector.broadcast %cst_52 : f32 to vector<32x128xf32>
    %53 = arith.maximumf %51, %52 : vector<32x128xf32>
    %54 = arith.truncf %53 : vector<32x128xf32> to vector<32x128xbf16>
    %cst_53 = arith.constant dense<0.000000e+00> : vector<32x128xf32>
    %55 = tpu.matmul %7, %54, %cst_53 {dimension_numbers = #tpu.dot_dimension_numbers<[1], [0], [0], [1], [0, 0, 1, 1], [], []>} : vector<32x32xbf16>, vector<32x128xbf16>, vector<32x128xf32> -> vector<32x128xf32>
    %56 = vector.broadcast %15 : vector<32x1xf32> to vector<32x128xf32>
    %57 = arith.addf %55, %56 : vector<32x128xf32>
    %cst_54 = arith.constant 0.000000e+00 : f32
    %58 = vector.broadcast %cst_54 : f32 to vector<32x128xf32>
    %59 = arith.maximumf %57, %58 : vector<32x128xf32>
    %60 = arith.truncf %59 : vector<32x128xf32> to vector<32x128xbf16>
    %cst_55 = arith.constant dense<0.000000e+00> : vector<4x128xf32>
    %61 = tpu.matmul %23, %60, %cst_55 {dimension_numbers = #tpu.dot_dimension_numbers<[1], [0], [0], [1], [0, 0, 1, 1], [], []>} : vector<4x32xbf16>, vector<32x128xbf16>, vector<4x128xf32> -> vector<4x128xf32>
    %62 = arith.addf %46, %61 : vector<4x128xf32>
    %cst_56 = arith.constant dense<0.000000e+00> : vector<32x128xf32>
    %63 = tpu.matmul %60, %26, %cst_56 {dimension_numbers = #tpu.dot_dimension_numbers<[1], [0], [0], [1], [0, 0, 1, 1], [], []>} : vector<32x128xbf16>, vector<128x128xbf16>, vector<32x128xf32> -> vector<32x128xf32>
    %64 = arith.truncf %63 : vector<32x128xf32> to vector<32x128xbf16>
    %cst_57 = arith.constant dense<0.000000e+00> : vector<32x128xf32>
    %65 = tpu.matmul %9, %64, %cst_57 {dimension_numbers = #tpu.dot_dimension_numbers<[1], [0], [0], [1], [0, 0, 1, 1], [], []>} : vector<32x32xbf16>, vector<32x128xbf16>, vector<32x128xf32> -> vector<32x128xf32>
    %66 = vector.broadcast %16 : vector<32x1xf32> to vector<32x128xf32>
    %67 = arith.addf %65, %66 : vector<32x128xf32>
    %cst_58 = arith.constant 0.000000e+00 : f32
    %68 = vector.broadcast %cst_58 : f32 to vector<32x128xf32>
    %69 = arith.maximumf %67, %68 : vector<32x128xf32>
    %70 = arith.truncf %69 : vector<32x128xf32> to vector<32x128xbf16>
    %cst_59 = arith.constant dense<0.000000e+00> : vector<32x128xf32>
    %71 = tpu.matmul %11, %70, %cst_59 {dimension_numbers = #tpu.dot_dimension_numbers<[1], [0], [0], [1], [0, 0, 1, 1], [], []>} : vector<32x32xbf16>, vector<32x128xbf16>, vector<32x128xf32> -> vector<32x128xf32>
    %72 = vector.broadcast %17 : vector<32x1xf32> to vector<32x128xf32>
    %73 = arith.addf %71, %72 : vector<32x128xf32>
    %cst_60 = arith.constant 0.000000e+00 : f32
    %74 = vector.broadcast %cst_60 : f32 to vector<32x128xf32>
    %75 = arith.maximumf %73, %74 : vector<32x128xf32>
    %76 = arith.truncf %75 : vector<32x128xf32> to vector<32x128xbf16>
    %cst_61 = arith.constant dense<0.000000e+00> : vector<4x128xf32>
    %77 = tpu.matmul %25, %76, %cst_61 {dimension_numbers = #tpu.dot_dimension_numbers<[1], [0], [0], [1], [0, 0, 1, 1], [], []>} : vector<4x32xbf16>, vector<32x128xbf16>, vector<4x128xf32> -> vector<4x128xf32>
    %78 = arith.addf %62, %77 : vector<4x128xf32>
    %79 = arith.truncf %78 : vector<4x128xf32> to vector<4x128xbf16>
    %cst_62 = arith.constant dense<0.000000e+00> : vector<2x4xf32>
    %80 = tpu.matmul %28, %79, %cst_62 {dimension_numbers = #tpu.dot_dimension_numbers<[1], [1], [0], [0], [0, 0, 1, 0], [], []>} : vector<2x128xbf16>, vector<4x128xbf16>, vector<2x4xf32> -> vector<2x4xf32>
    %81 = vector.broadcast %29 : vector<1x4xf32> to vector<2x4xf32>
    %82 = arith.addf %80, %81 : vector<2x4xf32>
    %cst_63 = arith.constant dense<0xFF800000> : vector<2xf32>
    %83 = vector.multi_reduction <maximumf>, %82, %cst_63 [1] : vector<2x4xf32> to vector<2xf32>
    %84 = vector.shape_cast %83 : vector<2xf32> to vector<2x1xf32>
    %85 = vector.broadcast %84 : vector<2x1xf32> to vector<2x4xf32>
    %86 = arith.subf %82, %85 : vector<2x4xf32>
    %87 = math.exp %86 : vector<2x4xf32>
    %cst_64 = arith.constant dense<0.000000e+00> : vector<2xf32>
    %88 = vector.multi_reduction <add>, %87, %cst_64 [1] : vector<2x4xf32> to vector<2xf32>
    %89 = vector.shape_cast %88 : vector<2xf32> to vector<2x1xf32>
    %90 = math.log %89 : vector<2x1xf32>
    %91 = arith.addf %84, %90 : vector<2x1xf32>
    %92 = vector.broadcast %91 : vector<2x1xf32> to vector<2x4xf32>
    %93 = arith.subf %82, %92 : vector<2x4xf32>
    %c0_65 = arith.constant 0 : index
    %c0_66 = arith.constant 0 : index
    %94 = vector.load %arg7[%c0_65, %c0_66] : memref<2x4xf32, #tpu.memory_space<vmem>>, vector<2x4xf32>
    tpu.vector_store %arg7[%c0_65, %c0_66], %93 {strides = array<i32>} : memref<2x4xf32, #tpu.memory_space<vmem>>, vector<2x4xf32>,
    return
  }
}

</mosaic_0001>

<llo_original>
// kernel: drop_gin_forward.1
$region0: #{drop_gin_forward.1}
  #allocation0 [shape = 'u32[]', space=smem, size = 0x4, offset = 0x4, fixed_abs, tag = 'smem constant byte address 0x4 - core index']
  #allocation1 [shape = 'u32[144,128]{1,0:T(1,128)}', space=vmem, size = 0x12000, scoped, tag = 'internal scratch']
  %s0 = inlined_call_operand.vmem [shape: bf16[128,128], index: 0, kind: input, shape index: {}]
  %s1 = inlined_call_operand.vmem [shape: bf16[32,128], index: 1, kind: input, shape index: {}]
  %s2 = inlined_call_operand.vmem [shape: bf16[2,128], index: 2, kind: input, shape index: {}]
  %s3 = inlined_call_operand.vmem [shape: bf16[6,32,32], index: 3, kind: input, shape index: {}]
  %s4 = inlined_call_operand.vmem [shape: f32[32,6], index: 4, kind: input, shape index: {}]
  %s5 = inlined_call_operand.vmem [shape: bf16[4,4,32], index: 5, kind: input, shape index: {}]
  %s6 = inlined_call_operand.vmem [shape: f32[1,4], index: 6, kind: input, shape index: {}]
  %s7 = inlined_call_operand.hbm [shape: f32[2,4], index: 7, kind: output, shape index: {}]
  %s8 = sld [smem:[#allocation0]]
  $region38: #{drop_gin_forward.1} parent=0
    _
  %s10 = ssub.s32 1, %s8
  %s11 = scalar_select 0, %s10, %s8
  $region1: #{drop_gin_forward.1} parent=0
    #allocation2 [shape = 'u8[1024]{0}', space=vmem, size = 0x400, scoped, tag = 'output window, operand 0, single buffered']
    #allocation3 [shape = 's32[1]{0}', space=sflag, size = 0x4, scoped, tag = 'scoped memory for drop_gin_forward.1']
    %12 = vsyncpa [#allocation3], 0
    // Predicated region
    $region2: #{drop_gin_forward.1} parent=1 // pred_check
      _
    $region3: #{drop_gin_forward.1} parent=1 // pred_check_branch
      %14 = sbr.rel (0) target = $region5
    $region4: #{drop_gin_forward.1} parent=1 // pred_region
      _
    $region5: #{drop_gin_forward.1} parent=1 // pred_fallthru
      _
    // Predicated region
    $region6: #{drop_gin_forward.1} parent=1 // pred_check
      _
    $region7: #{drop_gin_forward.1} parent=1 // pred_check_branch
      %16 = sbr.rel (0) target = $region9
    $region8: #{drop_gin_forward.1} parent=1 // pred_region
      _
    $region9: #{drop_gin_forward.1} parent=1 // pred_fallthru
      _
    // Predicated region
    $region10: #{drop_gin_forward.1} parent=1 // pred_check
      _
    $region11: #{drop_gin_forward.1} parent=1 // pred_check_branch
      %18 = sbr.rel (0) target = $region13
    $region12: #{drop_gin_forward.1} parent=1 // pred_region
      _
    $region13: #{drop_gin_forward.1} parent=1 // pred_fallthru
      _
    // Predicated region
    $region14: #{drop_gin_forward.1} parent=1 // pred_check
      _
    $region15: #{drop_gin_forward.1} parent=1 // pred_check_branch
      %20 = sbr.rel (0) target = $region17
    $region16: #{drop_gin_forward.1} parent=1 // pred_region
      _
    $region17: #{drop_gin_forward.1} parent=1 // pred_fallthru
      _
    // Predicated region
    $region18: #{drop_gin_forward.1} parent=1 // pred_check
      _
    $region19: #{drop_gin_forward.1} parent=1 // pred_check_branch
      %22 = sbr.rel (0) target = $region21
    $region20: #{drop_gin_forward.1} parent=1 // pred_region
      _
    $region21: #{drop_gin_forward.1} parent=1 // pred_fallthru
      _
    // Predicated region
    $region22: #{drop_gin_forward.1} parent=1 // pred_check
      _
    $region23: #{drop_gin_forward.1} parent=1 // pred_check_branch
      %24 = sbr.rel (0) target = $region25
    $region24: #{drop_gin_forward.1} parent=1 // pred_region
      _
    $region25: #{drop_gin_forward.1} parent=1 // pred_fallthru
      _
    // Predicated region
    $region26: #{drop_gin_forward.1} parent=1 // pred_check
      _
    $region27: #{drop_gin_forward.1} parent=1 // pred_check_branch
      %26 = sbr.rel (0) target = $region29
    $region28: #{drop_gin_forward.1} parent=1 // pred_region
      _
    $region29: #{drop_gin_forward.1} parent=1 // pred_fallthru
      _
    %v28 = vld [vmem:[%s3] sm:$0xf]
    %v29 = vld [vmem:[%s3 + $0x4] sm:$0xf]
    %v30 = vld [vmem:[%s3 + $0x8] sm:$0xf]
    %v31 = vld [vmem:[%s3 + $0xc] sm:$0xf]
    %s32 = scalar_lea.vmem %s3, 16
    %v33 = vld [vmem:[%s32] sm:$0xf]
    %v34 = vld [vmem:[%s32 + $0x4] sm:$0xf]
    %v35 = vld [vmem:[%s32 + $0x8] sm:$0xf]
    %v36 = vld [vmem:[%s32 + $0xc] sm:$0xf]
    %s37 = scalar_lea.vmem %s3, 32
    %v38 = vld [vmem:[%s37] sm:$0xf]
    %v39 = vld [vmem:[%s37 + $0x4] sm:$0xf]
    %v40 = vld [vmem:[%s37 + $0x8] sm:$0xf]
    %v41 = vld [vmem:[%s37 + $0xc] sm:$0xf]
    %s42 = scalar_lea.vmem %s3, 48
    %v43 = vld [vmem:[%s42] sm:$0xf]
    %v44 = vld [vmem:[%s42 + $0x4] sm:$0xf]
    %v45 = vld [vmem:[%s42 + $0x8] sm:$0xf]
    %v46 = vld [vmem:[%s42 + $0xc] sm:$0xf]
    %s47 = scalar_lea.vmem %s3, 64
    %v48 = vld [vmem:[%s47] sm:$0xf]
    %v49 = vld [vmem:[%s47 + $0x4] sm:$0xf]
    %v50 = vld [vmem:[%s47 + $0x8] sm:$0xf]
    %v51 = vld [vmem:[%s47 + $0xc] sm:$0xf]
    %s52 = scalar_lea.vmem %s3, 80
    %v53 = vld [vmem:[%s52] sm:$0xf]
    %v54 = vld [vmem:[%s52 + $0x4] sm:$0xf]
    %v55 = vld [vmem:[%s52 + $0x8] sm:$0xf]
    %v56 = vld [vmem:[%s52 + $0xc] sm:$0xf]
    %v57 = vld [vmem:[%s4] sm:$0xff]
    %v58 = vld [vmem:[%s4 + $0x8] sm:$0xff]
    %v59 = vld [vmem:[%s4 + $0x10] sm:$0xff]
    %v60 = vld [vmem:[%s4 + $0x18] sm:$0xff]
    %v61 = vld [vmem:[%s5] sm:$0x3]
    %s62 = scalar_lea.vmem %s5, 2
    %v63 = vld [vmem:[%s62] sm:$0x3]
    %s64 = scalar_lea.vmem %s5, 4
    %v65 = vld [vmem:[%s64] sm:$0x3]
    %s66 = scalar_lea.vmem %s5, 6
    %v67 = vld [vmem:[%s66] sm:$0x3]
    %v68 = vld [vmem:[%s0] sm:$0xf]
    %v69 = vld [vmem:[%s0 + $0x4] sm:$0xf]
    %v70 = vld [vmem:[%s0 + $0x8] sm:$0xf]
    %v71 = vld [vmem:[%s0 + $0xc] sm:$0xf]
    %v72 = vld [vmem:[%s0 + $0x10] sm:$0xf]
    %v73 = vld [vmem:[%s0 + $0x14] sm:$0xf]
    %v74 = vld [vmem:[%s0 + $0x18] sm:$0xf]
    %v75 = vld [vmem:[%s0 + $0x1c] sm:$0xf]
    %v76 = vld [vmem:[%s0 + $0x20] sm:$0xf]
    %v77 = vld [vmem:[%s0 + $0x24] sm:$0xf]
    %v78 = vld [vmem:[%s0 + $0x28] sm:$0xf]
    %v79 = vld [vmem:[%s0 + $0x2c] sm:$0xf]
    %v80 = vld [vmem:[%s0 + $0x30] sm:$0xf]
    %v81 = vld [vmem:[%s0 + $0x34] sm:$0xf]
    %v82 = vld [vmem:[%s0 + $0x38] sm:$0xf]
    %v83 = vld [vmem:[%s0 + $0x3c] sm:$0xf]
    %v84 = vld [vmem:[%s1] sm:$0xf]
    %v85 = vld [vmem:[%s1 + $0x4] sm:$0xf]
    %v86 = vld [vmem:[%s1 + $0x8] sm:$0xf]
    %v87 = vld [vmem:[%s1 + $0xc] sm:$0xf]
    %v88 = vld [vmem:[%s2] sm:$0x1]
    %v89 = vld [vmem:[%s6] sm:$0x1]
    %v94 = vunpack.c.l.b16 %v84
    %v95 = vunpack.c.l.b16 %v85
    %v96 = vunpack.c.l.b16 %v86
    %v97 = vunpack.c.l.b16 %v87
    %v98 = vpack.c.b16 %v95, %v94
    %v99 = vpack.c.b16 %v97, %v96
    %v118 = vunpack.c.l.b16 %v68
    %v119 = vunpack.c.l.b16 %v69
    %v120 = vunpack.c.l.b16 %v70
    %v121 = vunpack.c.l.b16 %v71
    %v122 = vunpack.c.l.b16 %v72
    %v123 = vunpack.c.l.b16 %v73
    %v124 = vunpack.c.l.b16 %v74
    %v125 = vunpack.c.l.b16 %v75
    %v126 = vunpack.c.l.b16 %v76
    %v127 = vunpack.c.l.b16 %v77
    %v128 = vunpack.c.l.b16 %v78
    %v129 = vunpack.c.l.b16 %v79
    %v130 = vunpack.c.l.b16 %v80
    %v131 = vunpack.c.l.b16 %v81
    %v132 = vunpack.c.l.b16 %v82
    %v133 = vunpack.c.l.b16 %v83
    %v134 = vpack.c.b16 %v119, %v118
    %v135 = vpack.c.b16 %v121, %v120
    %v136 = vpack.c.b16 %v123, %v122
    %v137 = vpack.c.b16 %v125, %v124
    %v138 = vpack.c.b16 %v127, %v126
    %v139 = vpack.c.b16 %v129, %v128
    %v140 = vpack.c.b16 %v131, %v130
    %v141 = vpack.c.b16 %v133, %v132
    %150 = vmatprep.subr.bf16.mxu0 0
    %151 = vmatpush1.bf16.msra.mxu0 %v141
    %152 = vmatprep.subr.bf16.mxu0 0
    %153 = vmatpush1.bf16.msra.mxu0 %v140
    %154 = vmatprep.subr.bf16.mxu0 0
    %155 = vmatpush1.bf16.msra.mxu0 %v139
    %156 = vmatprep.subr.bf16.mxu0 0
    %157 = vmatpush1.bf16.msra.mxu0 %v138
    %158 = vmatprep.subr.bf16.mxu0 0
    %159 = vmatpush1.bf16.msra.mxu0 %v137
    %160 = vmatprep.subr.bf16.mxu0 0
    %161 = vmatpush1.bf16.msra.mxu0 %v136
    %162 = vmatprep.subr.bf16.mxu0 0
    %163 = vmatpush1.bf16.msra.mxu0 %v135
    %164 = vmatprep.subr.bf16.mxu0 0
    %165 = vmatpush1.bf16.msra.mxu0 %v134
    %166 = vmatprep.subr.bf16.mxu0 0
    %167 = vmatpush2.bf16.msra.mxu0 0
    %168 = vmatprep.subr.bf16.mxu0 0
    %169 = vmatpush2.bf16.msra.mxu0 0
    %170 = vmatprep.subr.bf16.mxu0 0
    %171 = vmatpush2.bf16.msra.mxu0 0
    %172 = vmatprep.subr.bf16.mxu0 0
    %173 = vmatpush2.bf16.msra.mxu0 0
    %174 = vmatprep.subr.bf16.mxu0 0
    %175 = vmatpush2.bf16.msra.mxu0 0
    %176 = vmatprep.subr.bf16.mxu0 0
    %177 = vmatpush2.bf16.msra.mxu0 0
    %178 = vmatprep.subr.bf16.mxu0 0
    %179 = vmatpush2.bf16.msra.mxu0 0
    %180 = vmatprep.subr.bf16.mxu0 0
    %181 = vmatpush2.bf16.msra.mxu0 0
    %182 = vmatprep.mubr.bf16.mxu0 0
    %183 = vmatmul.mubr.bf16.gmra.mxu0 %v98
    %v184 = vpop.f32.mrf.mxu0
    %v185 = vadd.f32 0.0, %v184
    %v186 = vpop.f32.mrf.mxu0
    %v187 = vpop.f32.mrf.mxu0
    %v188 = vadd.f32 0.0, %v187
    %v189 = vpop.f32.mrf.mxu0
    %190 = vmatprep.mubr.bf16.mxu0 0
    %191 = vmatmul.mubr.bf16.gmra.mxu0 %v99
    %v192 = vpop.f32.mrf.mxu0
    %v193 = vadd.f32 0.0, %v192
    %v194 = vpop.f32.mrf.mxu0
    %v195 = vpop.f32.mrf.mxu0
    %v196 = vadd.f32 0.0, %v195
    %v197 = vpop.f32.mrf.mxu0
    %198 = vdwg.mxu0
    %v199 = vpack.c.bf16 %v188, %v185
    %v200 = vpack.c.bf16 %v196, %v193
    %202 = vset.pattern.permute.xlu0 0
    %203 = vperm.xlu0 %202, %v57
    %v204 = vpop.permute.xlu0 %203
    %207 = vset.pattern.permute.xlu0 0
    %208 = vperm.xlu0 %207, %v58
    %v209 = vpop.permute.xlu0 %208
    %212 = vset.pattern.permute.xlu0 0
    %213 = vperm.xlu0 %212, %v59
    %v214 = vpop.permute.xlu0 %213
    %217 = vset.pattern.permute.xlu0 0
    %218 = vperm.xlu0 %217, %v60
    %v219 = vpop.permute.xlu0 %218
    %v225 = vunpack.c.l.b16 %v28
    %v226 = vunpack.c.l.b16 %v29
    %v227 = vunpack.c.l.b16 %v30
    %v228 = vunpack.c.l.b16 %v31
    %v229 = vpack.c.b16 %v226, %v225
    %v230 = vpack.c.b16 %v228, %v227
    %vm231 = vcmask 261120
    %v233 = vsel %vm231, %v229, 0
    %v236 = vsel %vm231, %v230, 0
    %238 = vmatprep.subr.bf16.mxu0 0
    %239 = vmatpush1.bf16.msra.mxu0 0
    %240 = vmatprep.subr.bf16.mxu0 0
    %241 = vmatpush1.bf16.msra.mxu0 0
    %242 = vmatprep.subr.bf16.mxu0 0
    %243 = vmatpush1.bf16.msra.mxu0 0
    %244 = vmatprep.subr.bf16.mxu0 0
    %245 = vmatpush1.bf16.msra.mxu0 0
    %246 = vmatprep.subr.bf16.mxu0 0
    %247 = vmatpush1.bf16.msra.mxu0 0
    %248 = vmatprep.subr.bf16.mxu0 0
    %249 = vmatpush1.bf16.msra.mxu0 0
    %250 = vmatprep.subr.bf16.mxu0 0
    %251 = vmatpush1.bf16.msra.mxu0 %v200
    %252 = vmatprep.subr.bf16.mxu0 0
    %253 = vmatpush1.bf16.msra.mxu0 %v199
    %254 = vmatprep.subr.bf16.mxu0 0
    %255 = vmatpush2.bf16.msra.mxu0 0
    %256 = vmatprep.subr.bf16.mxu0 0
    %257 = vmatpush2.bf16.msra.mxu0 0
    %258 = vmatprep.subr.bf16.mxu0 0
    %259 = vmatpush2.bf16.msra.mxu0 0
    %260 = vmatprep.subr.bf16.mxu0 0
    %261 = vmatpush2.bf16.msra.mxu0 0
    %262 = vmatprep.subr.bf16.mxu0 0
    %263 = vmatpush2.bf16.msra.mxu0 0
    %264 = vmatprep.subr.bf16.mxu0 0
    %265 = vmatpush2.bf16.msra.mxu0 0
    %266 = vmatprep.subr.bf16.mxu0 0
    %267 = vmatpush2.bf16.msra.mxu0 0
    %268 = vmatprep.subr.bf16.mxu0 0
    %269 = vmatpush2.bf16.msra.mxu0 0
    %270 = vmatprep.mubr.bf16.mxu0 0
    %271 = vmatmul.mubr.bf16.gmra.mxu0 %v233
    %v272 = vpop.f32.mrf.mxu0
    %v273 = vadd.f32 %v204, %v272
    %v274 = vpop.f32.mrf.mxu0
    %v275 = vpop.f32.mrf.mxu0
    %v276 = vadd.f32 %v209, %v275
    %v277 = vpop.f32.mrf.mxu0
    %278 = vmatprep.mubr.bf16.mxu0 0
    %279 = vmatmul.mubr.bf16.gmra.mxu0 %v236
    %v280 = vpop.f32.mrf.mxu0
    %v281 = vadd.f32 %v214, %v280
    %v282 = vpop.f32.mrf.mxu0
    %v283 = vpop.f32.mrf.mxu0
    %v284 = vadd.f32 %v219, %v283
    %v285 = vpop.f32.mrf.mxu0
    %286 = vdwg.mxu0
    %v287 = vmax.f32 %v273, 0.0
    %v288 = vmax.f32 %v276, 0.0
    %v289 = vmax.f32 %v281, 0.0
    %v290 = vmax.f32 %v284, 0.0
    %v291 = vpack.c.bf16 %v288, %v287
    %v292 = vpack.c.bf16 %v290, %v289
    %293 = vset.pattern.permute.xlu0 1
    %294 = vperm.xlu0 %293, %v57
    %v295 = vpop.permute.xlu0 %294
    %297 = vset.pattern.permute.xlu0 1
    %298 = vperm.xlu0 %297, %v58
    %v299 = vpop.permute.xlu0 %298
    %301 = vset.pattern.permute.xlu0 1
    %302 = vperm.xlu0 %301, %v59
    %v303 = vpop.permute.xlu0 %302
    %305 = vset.pattern.permute.xlu0 1
    %306 = vperm.xlu0 %305, %v60
    %v307 = vpop.permute.xlu0 %306
    %v313 = vunpack.c.l.b16 %v33
    %v314 = vunpack.c.l.b16 %v34
    %v315 = vunpack.c.l.b16 %v35
    %v316 = vunpack.c.l.b16 %v36
    %v317 = vpack.c.b16 %v314, %v313
    %v318 = vpack.c.b16 %v316, %v315
    %v320 = vsel %vm231, %v317, 0
    %v323 = vsel %vm231, %v318, 0
    %325 = vmatprep.subr.bf16.mxu0 0
    %326 = vmatpush1.bf16.msra.mxu0 0
    %327 = vmatprep.subr.bf16.mxu0 0
    %328 = vmatpush1.bf16.msra.mxu0 0
    %329 = vmatprep.subr.bf16.mxu0 0
    %330 = vmatpush1.bf16.msra.mxu0 0
    %331 = vmatprep.subr.bf16.mxu0 0
    %332 = vmatpush1.bf16.msra.mxu0 0
    %333 = vmatprep.subr.bf16.mxu0 0
    %334 = vmatpush1.bf16.msra.mxu0 0
    %335 = vmatprep.subr.bf16.mxu0 0
    %336 = vmatpush1.bf16.msra.mxu0 0
    %337 = vmatprep.subr.bf16.mxu0 0
    %338 = vmatpush1.bf16.msra.mxu0 %v292
    %339 = vmatprep.subr.bf16.mxu0 0
    %340 = vmatpush1.bf16.msra.mxu0 %v291
    %341 = vmatprep.subr.bf16.mxu0 0
    %342 = vmatpush2.bf16.msra.mxu0 0
    %343 = vmatprep.subr.bf16.mxu0 0
    %344 = vmatpush2.bf16.msra.mxu0 0
    %345 = vmatprep.subr.bf16.mxu0 0
    %346 = vmatpush2.bf16.msra.mxu0 0
    %347 = vmatprep.subr.bf16.mxu0 0
    %348 = vmatpush2.bf16.msra.mxu0 0
    %349 = vmatprep.subr.bf16.mxu0 0
    %350 = vmatpush2.bf16.msra.mxu0 0
    %351 = vmatprep.subr.bf16.mxu0 0
    %352 = vmatpush2.bf16.msra.mxu0 0
    %353 = vmatprep.subr.bf16.mxu0 0
    %354 = vmatpush2.bf16.msra.mxu0 0
    %355 = vmatprep.subr.bf16.mxu0 0
    %356 = vmatpush2.bf16.msra.mxu0 0
    %357 = vmatprep.mubr.bf16.mxu0 0
    %358 = vmatmul.mubr.bf16.gmra.mxu0 %v320
    %v359 = vpop.f32.mrf.mxu0
    %v360 = vadd.f32 %v295, %v359
    %v361 = vpop.f32.mrf.mxu0
    %v362 = vpop.f32.mrf.mxu0
    %v363 = vadd.f32 %v299, %v362
    %v364 = vpop.f32.mrf.mxu0
    %365 = vmatprep.mubr.bf16.mxu0 0
    %366 = vmatmul.mubr.bf16.gmra.mxu0 %v323
    %v367 = vpop.f32.mrf.mxu0
    %v368 = vadd.f32 %v303, %v367
    %v369 = vpop.f32.mrf.mxu0
    %v370 = vpop.f32.mrf.mxu0
    %v371 = vadd.f32 %v307, %v370
    %v372 = vpop.f32.mrf.mxu0
    %373 = vdwg.mxu0
    %v374 = vmax.f32 %v360, 0.0
    %v375 = vmax.f32 %v363, 0.0
    %v376 = vmax.f32 %v368, 0.0
    %v377 = vmax.f32 %v371, 0.0
    %v378 = vpack.c.bf16 %v375, %v374
    %v379 = vpack.c.bf16 %v377, %v376
    %v381 = vsel %vm231, %v63, 0
    %383 = vmatprep.subr.bf16.mxu0 0
    %384 = vmatpush1.bf16.msra.mxu0 0
    %385 = vmatprep.subr.bf16.mxu0 0
    %386 = vmatpush1.bf16.msra.mxu0 0
    %387 = vmatprep.subr.bf16.mxu0 0
    %388 = vmatpush1.bf16.msra.mxu0 0
    %389 = vmatprep.subr.bf16.mxu0 0
    %390 = vmatpush1.bf16.msra.mxu0 0
    %391 = vmatprep.subr.bf16.mxu0 0
    %392 = vmatpush1.bf16.msra.mxu0 0
    %393 = vmatprep.subr.bf16.mxu0 0
    %394 = vmatpush1.bf16.msra.mxu0 0
    %395 = vmatprep.subr.bf16.mxu0 0
    %396 = vmatpush1.bf16.msra.mxu0 %v379
    %397 = vmatprep.subr.bf16.mxu0 0
    %398 = vmatpush1.bf16.msra.mxu0 %v378
    %399 = vmatprep.subr.bf16.mxu0 0
    %400 = vmatpush2.bf16.msra.mxu0 0
    %401 = vmatprep.subr.bf16.mxu0 0
    %402 = vmatpush2.bf16.msra.mxu0 0
    %403 = vmatprep.subr.bf16.mxu0 0
    %404 = vmatpush2.bf16.msra.mxu0 0
    %405 = vmatprep.subr.bf16.mxu0 0
    %406 = vmatpush2.bf16.msra.mxu0 0
    %407 = vmatprep.subr.bf16.mxu0 0
    %408 = vmatpush2.bf16.msra.mxu0 0
    %409 = vmatprep.subr.bf16.mxu0 0
    %410 = vmatpush2.bf16.msra.mxu0 0
    %411 = vmatprep.subr.bf16.mxu0 0
    %412 = vmatpush2.bf16.msra.mxu0 0
    %413 = vmatprep.subr.bf16.mxu0 0
    %414 = vmatpush2.bf16.msra.mxu0 0
    %415 = vmatprep.mubr.bf16.mxu0 0
    %416 = vmatmul.mubr.bf16.gmra.mxu0 %v381
    %v417 = vpop.f32.mrf.mxu0
    %v418 = vadd.f32 0.0, %v417
    %v419 = vpop.f32.mrf.mxu0
    %v420 = vpop.f32.mrf.mxu0
    %v421 = vpop.f32.mrf.mxu0
    %422 = vdwg.mxu0
    %v424 = vsel %vm231, %v61, 0
    %426 = vmatprep.subr.bf16.mxu0 0
    %427 = vmatpush1.bf16.msra.mxu0 0
    %428 = vmatprep.subr.bf16.mxu0 0
    %429 = vmatpush1.bf16.msra.mxu0 0
    %430 = vmatprep.subr.bf16.mxu0 0
    %431 = vmatpush1.bf16.msra.mxu0 0
    %432 = vmatprep.subr.bf16.mxu0 0
    %433 = vmatpush1.bf16.msra.mxu0 0
    %434 = vmatprep.subr.bf16.mxu0 0
    %435 = vmatpush1.bf16.msra.mxu0 0
    %436 = vmatprep.subr.bf16.mxu0 0
    %437 = vmatpush1.bf16.msra.mxu0 0
    %438 = vmatprep.subr.bf16.mxu0 0
    %439 = vmatpush1.bf16.msra.mxu0 %v99
    %440 = vmatprep.subr.bf16.mxu0 0
    %441 = vmatpush1.bf16.msra.mxu0 %v98
    %442 = vmatprep.subr.bf16.mxu0 0
    %443 = vmatpush2.bf16.msra.mxu0 0
    %444 = vmatprep.subr.bf16.mxu0 0
    %445 = vmatpush2.bf16.msra.mxu0 0
    %446 = vmatprep.subr.bf16.mxu0 0
    %447 = vmatpush2.bf16.msra.mxu0 0
    %448 = vmatprep.subr.bf16.mxu0 0
    %449 = vmatpush2.bf16.msra.mxu0 0
    %450 = vmatprep.subr.bf16.mxu0 0
    %451 = vmatpush2.bf16.msra.mxu0 0
    %452 = vmatprep.subr.bf16.mxu0 0
    %453 = vmatpush2.bf16.msra.mxu0 0
    %454 = vmatprep.subr.bf16.mxu0 0
    %455 = vmatpush2.bf16.msra.mxu0 0
    %456 = vmatprep.subr.bf16.mxu0 0
    %457 = vmatpush2.bf16.msra.mxu0 0
    %458 = vmatprep.mubr.bf16.mxu0 0
    %459 = vmatmul.mubr.bf16.gmra.mxu0 %v424
    %v460 = vpop.f32.mrf.mxu0
    %v461 = vadd.f32 %v418, %v460
    %v462 = vpop.f32.mrf.mxu0
    %v463 = vpop.f32.mrf.mxu0
    %v464 = vpop.f32.mrf.mxu0
    %465 = vdwg.mxu0
    %466 = vmatprep.subr.bf16.mxu0 0
    %467 = vmatpush1.bf16.msra.mxu0 %v141
    %468 = vmatprep.subr.bf16.mxu0 0
    %469 = vmatpush1.bf16.msra.mxu0 %v140
    %470 = vmatprep.subr.bf16.mxu0 0
    %471 = vmatpush1.bf16.msra.mxu0 %v139
    %472 = vmatprep.subr.bf16.mxu0 0
    %473 = vmatpush1.bf16.msra.mxu0 %v138
    %474 = vmatprep.subr.bf16.mxu0 0
    %475 = vmatpush1.bf16.msra.mxu0 %v137
    %476 = vmatprep.subr.bf16.mxu0 0
    %477 = vmatpush1.bf16.msra.mxu0 %v136
    %478 = vmatprep.subr.bf16.mxu0 0
    %479 = vmatpush1.bf16.msra.mxu0 %v135
    %480 = vmatprep.subr.bf16.mxu0 0
    %481 = vmatpush1.bf16.msra.mxu0 %v134
    %482 = vmatprep.subr.bf16.mxu0 0
    %483 = vmatpush2.bf16.msra.mxu0 0
    %484 = vmatprep.subr.bf16.mxu0 0
    %485 = vmatpush2.bf16.msra.mxu0 0
    %486 = vmatprep.subr.bf16.mxu0 0
    %487 = vmatpush2.bf16.msra.mxu0 0
    %488 = vmatprep.subr.bf16.mxu0 0
    %489 = vmatpush2.bf16.msra.mxu0 0
    %490 = vmatprep.subr.bf16.mxu0 0
    %491 = vmatpush2.bf16.msra.mxu0 0
    %492 = vmatprep.subr.bf16.mxu0 0
    %493 = vmatpush2.bf16.msra.mxu0 0
    %494 = vmatprep.subr.bf16.mxu0 0
    %495 = vmatpush2.bf16.msra.mxu0 0
    %496 = vmatprep.subr.bf16.mxu0 0
    %497 = vmatpush2.bf16.msra.mxu0 0
    %498 = vmatprep.mubr.bf16.mxu0 0
    %499 = vmatmul.mubr.bf16.gmra.mxu0 %v378
    %v500 = vpop.f32.mrf.mxu0
    %v501 = vadd.f32 0.0, %v500
    %v502 = vpop.f32.mrf.mxu0
    %v503 = vpop.f32.mrf.mxu0
    %v504 = vadd.f32 0.0, %v503
    %v505 = vpop.f32.mrf.mxu0
    %506 = vmatprep.mubr.bf16.mxu0 0
    %507 = vmatmul.mubr.bf16.gmra.mxu0 %v379
    %v508 = vpop.f32.mrf.mxu0
    %v509 = vadd.f32 0.0, %v508
    %v510 = vpop.f32.mrf.mxu0
    %v511 = vpop.f32.mrf.mxu0
    %v512 = vadd.f32 0.0, %v511
    %v513 = vpop.f32.mrf.mxu0
    %514 = vdwg.mxu0
    %v515 = vpack.c.bf16 %v504, %v501
    %v516 = vpack.c.bf16 %v512, %v509
    %517 = vset.pattern.permute.xlu0 2
    %518 = vperm.xlu0 %517, %v57
    %v519 = vpop.permute.xlu0 %518
    %521 = vset.pattern.permute.xlu0 2
    %522 = vperm.xlu0 %521, %v58
    %v523 = vpop.permute.xlu0 %522
    %525 = vset.pattern.permute.xlu0 2
    %526 = vperm.xlu0 %525, %v59
    %v527 = vpop.permute.xlu0 %526
    %529 = vset.pattern.permute.xlu0 2
    %530 = vperm.xlu0 %529, %v60
    %v531 = vpop.permute.xlu0 %530
    %v537 = vunpack.c.l.b16 %v38
    %v538 = vunpack.c.l.b16 %v39
    %v539 = vunpack.c.l.b16 %v40
    %v540 = vunpack.c.l.b16 %v41
    %v541 = vpack.c.b16 %v538, %v537
    %v542 = vpack.c.b16 %v540, %v539
    %v544 = vsel %vm231, %v541, 0
    %v547 = vsel %vm231, %v542, 0
    %549 = vmatprep.subr.bf16.mxu0 0
    %550 = vmatpush1.bf16.msra.mxu0 0
    %551 = vmatprep.subr.bf16.mxu0 0
    %552 = vmatpush1.bf16.msra.mxu0 0
    %553 = vmatprep.subr.bf16.mxu0 0
    %554 = vmatpush1.bf16.msra.mxu0 0
    %555 = vmatprep.subr.bf16.mxu0 0
    %556 = vmatpush1.bf16.msra.mxu0 0
    %557 = vmatprep.subr.bf16.mxu0 0
    %558 = vmatpush1.bf16.msra.mxu0 0
    %559 = vmatprep.subr.bf16.mxu0 0
    %560 = vmatpush1.bf16.msra.mxu0 0
    %561 = vmatprep.subr.bf16.mxu0 0
    %562 = vmatpush1.bf16.msra.mxu0 %v516
    %563 = vmatprep.subr.bf16.mxu0 0
    %564 = vmatpush1.bf16.msra.mxu0 %v515
    %565 = vmatprep.subr.bf16.mxu0 0
    %566 = vmatpush2.bf16.msra.mxu0 0
    %567 = vmatprep.subr.bf16.mxu0 0
    %568 = vmatpush2.bf16.msra.mxu0 0
    %569 = vmatprep.subr.bf16.mxu0 0
    %570 = vmatpush2.bf16.msra.mxu0 0
    %571 = vmatprep.subr.bf16.mxu0 0
    %572 = vmatpush2.bf16.msra.mxu0 0
    %573 = vmatprep.subr.bf16.mxu0 0
    %574 = vmatpush2.bf16.msra.mxu0 0
    %575 = vmatprep.subr.bf16.mxu0 0
    %576 = vmatpush2.bf16.msra.mxu0 0
    %577 = vmatprep.subr.bf16.mxu0 0
    %578 = vmatpush2.bf16.msra.mxu0 0
    %579 = vmatprep.subr.bf16.mxu0 0
    %580 = vmatpush2.bf16.msra.mxu0 0
    %581 = vmatprep.mubr.bf16.mxu0 0
    %582 = vmatmul.mubr.bf16.gmra.mxu0 %v544
    %v583 = vpop.f32.mrf.mxu0
    %v584 = vadd.f32 %v519, %v583
    %v585 = vpop.f32.mrf.mxu0
    %v586 = vpop.f32.mrf.mxu0
    %v587 = vadd.f32 %v523, %v586
    %v588 = vpop.f32.mrf.mxu0
    %589 = vmatprep.mubr.bf16.mxu0 0
    %590 = vmatmul.mubr.bf16.gmra.mxu0 %v547
    %v591 = vpop.f32.mrf.mxu0
    %v592 = vadd.f32 %v527, %v591
    %v593 = vpop.f32.mrf.mxu0
    %v594 = vpop.f32.mrf.mxu0
    %v595 = vadd.f32 %v531, %v594
    %v596 = vpop.f32.mrf.mxu0
    %597 = vdwg.mxu0
    %v598 = vmax.f32 %v584, 0.0
    %v599 = vmax.f32 %v587, 0.0
    %v600 = vmax.f32 %v592, 0.0
    %v601 = vmax.f32 %v595, 0.0
    %v602 = vpack.c.bf16 %v599, %v598
    %v603 = vpack.c.bf16 %v601, %v600
    %604 = vset.pattern.permute.xlu0 3
    %605 = vperm.xlu0 %604, %v57
    %v606 = vpop.permute.xlu0 %605
    %608 = vset.pattern.permute.xlu0 3
    %609 = vperm.xlu0 %608, %v58
    %v610 = vpop.permute.xlu0 %609
    %612 = vset.pattern.permute.xlu0 3
    %613 = vperm.xlu0 %612, %v59
    %v614 = vpop.permute.xlu0 %613
    %616 = vset.pattern.permute.xlu0 3
    %617 = vperm.xlu0 %616, %v60
    %v618 = vpop.permute.xlu0 %617
    %v624 = vunpack.c.l.b16 %v43
    %v625 = vunpack.c.l.b16 %v44
    %v626 = vunpack.c.l.b16 %v45
    %v627 = vunpack.c.l.b16 %v46
    %v628 = vpack.c.b16 %v625, %v624
    %v629 = vpack.c.b16 %v627, %v626
    %v631 = vsel %vm231, %v628, 0
    %v634 = vsel %vm231, %v629, 0
    %636 = vmatprep.subr.bf16.mxu0 0
    %637 = vmatpush1.bf16.msra.mxu0 0
    %638 = vmatprep.subr.bf16.mxu0 0
    %639 = vmatpush1.bf16.msra.mxu0 0
    %640 = vmatprep.subr.bf16.mxu0 0
    %641 = vmatpush1.bf16.msra.mxu0 0
    %642 = vmatprep.subr.bf16.mxu0 0
    %643 = vmatpush1.bf16.msra.mxu0 0
    %644 = vmatprep.subr.bf16.mxu0 0
    %645 = vmatpush1.bf16.msra.mxu0 0
    %646 = vmatprep.subr.bf16.mxu0 0
    %647 = vmatpush1.bf16.msra.mxu0 0
    %648 = vmatprep.subr.bf16.mxu0 0
    %649 = vmatpush1.bf16.msra.mxu0 %v603
    %650 = vmatprep.subr.bf16.mxu0 0
    %651 = vmatpush1.bf16.msra.mxu0 %v602
    %652 = vmatprep.subr.bf16.mxu0 0
    %653 = vmatpush2.bf16.msra.mxu0 0
    %654 = vmatprep.subr.bf16.mxu0 0
    %655 = vmatpush2.bf16.msra.mxu0 0
    %656 = vmatprep.subr.bf16.mxu0 0
    %657 = vmatpush2.bf16.msra.mxu0 0
    %658 = vmatprep.subr.bf16.mxu0 0
    %659 = vmatpush2.bf16.msra.mxu0 0
    %660 = vmatprep.subr.bf16.mxu0 0
    %661 = vmatpush2.bf16.msra.mxu0 0
    %662 = vmatprep.subr.bf16.mxu0 0
    %663 = vmatpush2.bf16.msra.mxu0 0
    %664 = vmatprep.subr.bf16.mxu0 0
    %665 = vmatpush2.bf16.msra.mxu0 0
    %666 = vmatprep.subr.bf16.mxu0 0
    %667 = vmatpush2.bf16.msra.mxu0 0
    %668 = vmatprep.mubr.bf16.mxu0 0
    %669 = vmatmul.mubr.bf16.gmra.mxu0 %v631
    %v670 = vpop.f32.mrf.mxu0
    %v671 = vadd.f32 %v606, %v670
    %v672 = vpop.f32.mrf.mxu0
    %v673 = vpop.f32.mrf.mxu0
    %v674 = vadd.f32 %v610, %v673
    %v675 = vpop.f32.mrf.mxu0
    %676 = vmatprep.mubr.bf16.mxu0 0
    %677 = vmatmul.mubr.bf16.gmra.mxu0 %v634
    %v678 = vpop.f32.mrf.mxu0
    %v679 = vadd.f32 %v614, %v678
    %v680 = vpop.f32.mrf.mxu0
    %v681 = vpop.f32.mrf.mxu0
    %v682 = vadd.f32 %v618, %v681
    %v683 = vpop.f32.mrf.mxu0
    %684 = vdwg.mxu0
    %v685 = vmax.f32 %v671, 0.0
    %v686 = vmax.f32 %v674, 0.0
    %v687 = vmax.f32 %v679, 0.0
    %v688 = vmax.f32 %v682, 0.0
    %v689 = vpack.c.bf16 %v686, %v685
    %v690 = vpack.c.bf16 %v688, %v687
    %v692 = vsel %vm231, %v65, 0
    %694 = vmatprep.subr.bf16.mxu0 0
    %695 = vmatpush1.bf16.msra.mxu0 0
    %696 = vmatprep.subr.bf16.mxu0 0
    %697 = vmatpush1.bf16.msra.mxu0 0
    %698 = vmatprep.subr.bf16.mxu0 0
    %699 = vmatpush1.bf16.msra.mxu0 0
    %700 = vmatprep.subr.bf16.mxu0 0
    %701 = vmatpush1.bf16.msra.mxu0 0
    %702 = vmatprep.subr.bf16.mxu0 0
    %703 = vmatpush1.bf16.msra.mxu0 0
    %704 = vmatprep.subr.bf16.mxu0 0
    %705 = vmatpush1.bf16.msra.mxu0 0
    %706 = vmatprep.subr.bf16.mxu0 0
    %707 = vmatpush1.bf16.msra.mxu0 %v690
    %708 = vmatprep.subr.bf16.mxu0 0
    %709 = vmatpush1.bf16.msra.mxu0 %v689
    %710 = vmatprep.subr.bf16.mxu0 0
    %711 = vmatpush2.bf16.msra.mxu0 0
    %712 = vmatprep.subr.bf16.mxu0 0
    %713 = vmatpush2.bf16.msra.mxu0 0
    %714 = vmatprep.subr.bf16.mxu0 0
    %715 = vmatpush2.bf16.msra.mxu0 0
    %716 = vmatprep.subr.bf16.mxu0 0
    %717 = vmatpush2.bf16.msra.mxu0 0
    %718 = vmatprep.subr.bf16.mxu0 0
    %719 = vmatpush2.bf16.msra.mxu0 0
    %720 = vmatprep.subr.bf16.mxu0 0
    %721 = vmatpush2.bf16.msra.mxu0 0
    %722 = vmatprep.subr.bf16.mxu0 0
    %723 = vmatpush2.bf16.msra.mxu0 0
    %724 = vmatprep.subr.bf16.mxu0 0
    %725 = vmatpush2.bf16.msra.mxu0 0
    %726 = vmatprep.mubr.bf16.mxu0 0
    %727 = vmatmul.mubr.bf16.gmra.mxu0 %v692
    %v728 = vpop.f32.mrf.mxu0
    %v729 = vadd.f32 0.0, %v728
    %v730 = vpop.f32.mrf.mxu0
    %v731 = vpop.f32.mrf.mxu0
    %v732 = vpop.f32.mrf.mxu0
    %733 = vdwg.mxu0
    %v734 = vadd.f32 %v461, %v729
    %735 = vmatprep.subr.bf16.mxu0 0
    %736 = vmatpush1.bf16.msra.mxu0 %v141
    %737 = vmatprep.subr.bf16.mxu0 0
    %738 = vmatpush1.bf16.msra.mxu0 %v140
    %739 = vmatprep.subr.bf16.mxu0 0
    %740 = vmatpush1.bf16.msra.mxu0 %v139
    %741 = vmatprep.subr.bf16.mxu0 0
    %742 = vmatpush1.bf16.msra.mxu0 %v138
    %743 = vmatprep.subr.bf16.mxu0 0
    %744 = vmatpush1.bf16.msra.mxu0 %v137
    %745 = vmatprep.subr.bf16.mxu0 0
    %746 = vmatpush1.bf16.msra.mxu0 %v136
    %747 = vmatprep.subr.bf16.mxu0 0
    %748 = vmatpush1.bf16.msra.mxu0 %v135
    %749 = vmatprep.subr.bf16.mxu0 0
    %750 = vmatpush1.bf16.msra.mxu0 %v134
    %751 = vmatprep.subr.bf16.mxu0 0
    %752 = vmatpush2.bf16.msra.mxu0 0
    %753 = vmatprep.subr.bf16.mxu0 0
    %754 = vmatpush2.bf16.msra.mxu0 0
    %755 = vmatprep.subr.bf16.mxu0 0
    %756 = vmatpush2.bf16.msra.mxu0 0
    %757 = vmatprep.subr.bf16.mxu0 0
    %758 = vmatpush2.bf16.msra.mxu0 0
    %759 = vmatprep.subr.bf16.mxu0 0
    %760 = vmatpush2.bf16.msra.mxu0 0
    %761 = vmatprep.subr.bf16.mxu0 0
    %762 = vmatpush2.bf16.msra.mxu0 0
    %763 = vmatprep.subr.bf16.mxu0 0
    %764 = vmatpush2.bf16.msra.mxu0 0
    %765 = vmatprep.subr.bf16.mxu0 0
    %766 = vmatpush2.bf16.msra.mxu0 0
    %767 = vmatprep.mubr.bf16.mxu0 0
    %768 = vmatmul.mubr.bf16.gmra.mxu0 %v689
    %v769 = vpop.f32.mrf.mxu0
    %v770 = vadd.f32 0.0, %v769
    %v771 = vpop.f32.mrf.mxu0
    %v772 = vpop.f32.mrf.mxu0
    %v773 = vadd.f32 0.0, %v772
    %v774 = vpop.f32.mrf.mxu0
    %775 = vmatprep.mubr.bf16.mxu0 0
    %776 = vmatmul.mubr.bf16.gmra.mxu0 %v690
    %v777 = vpop.f32.mrf.mxu0
    %v778 = vadd.f32 0.0, %v777
    %v779 = vpop.f32.mrf.mxu0
    %v780 = vpop.f32.mrf.mxu0
    %v781 = vadd.f32 0.0, %v780
    %v782 = vpop.f32.mrf.mxu0
    %783 = vdwg.mxu0
    %v784 = vpack.c.bf16 %v773, %v770
    %v785 = vpack.c.bf16 %v781, %v778
    %786 = vset.pattern.permute.xlu0 4
    %787 = vperm.xlu0 %786, %v57
    %v788 = vpop.permute.xlu0 %787
    %790 = vset.pattern.permute.xlu0 4
    %791 = vperm.xlu0 %790, %v58
    %v792 = vpop.permute.xlu0 %791
    %794 = vset.pattern.permute.xlu0 4
    %795 = vperm.xlu0 %794, %v59
    %v796 = vpop.permute.xlu0 %795
    %798 = vset.pattern.permute.xlu0 4
    %799 = vperm.xlu0 %798, %v60
    %v800 = vpop.permute.xlu0 %799
    %v806 = vunpack.c.l.b16 %v48
    %v807 = vunpack.c.l.b16 %v49
    %v808 = vunpack.c.l.b16 %v50
    %v809 = vunpack.c.l.b16 %v51
    %v810 = vpack.c.b16 %v807, %v806
    %v811 = vpack.c.b16 %v809, %v808
    %v813 = vsel %vm231, %v810, 0
    %v816 = vsel %vm231, %v811, 0
    %818 = vmatprep.subr.bf16.mxu0 0
    %819 = vmatpush1.bf16.msra.mxu0 0
    %820 = vmatprep.subr.bf16.mxu0 0
    %821 = vmatpush1.bf16.msra.mxu0 0
    %822 = vmatprep.subr.bf16.mxu0 0
    %823 = vmatpush1.bf16.msra.mxu0 0
    %824 = vmatprep.subr.bf16.mxu0 0
    %825 = vmatpush1.bf16.msra.mxu0 0
    %826 = vmatprep.subr.bf16.mxu0 0
    %827 = vmatpush1.bf16.msra.mxu0 0
    %828 = vmatprep.subr.bf16.mxu0 0
    %829 = vmatpush1.bf16.msra.mxu0 0
    %830 = vmatprep.subr.bf16.mxu0 0
    %831 = vmatpush1.bf16.msra.mxu0 %v785
    %832 = vmatprep.subr.bf16.mxu0 0
    %833 = vmatpush1.bf16.msra.mxu0 %v784
    %834 = vmatprep.subr.bf16.mxu0 0
    %835 = vmatpush2.bf16.msra.mxu0 0
    %836 = vmatprep.subr.bf16.mxu0 0
    %837 = vmatpush2.bf16.msra.mxu0 0
    %838 = vmatprep.subr.bf16.mxu0 0
    %839 = vmatpush2.bf16.msra.mxu0 0
    %840 = vmatprep.subr.bf16.mxu0 0
    %841 = vmatpush2.bf16.msra.mxu0 0
    %842 = vmatprep.subr.bf16.mxu0 0
    %843 = vmatpush2.bf16.msra.mxu0 0
    %844 = vmatprep.subr.bf16.mxu0 0
    %845 = vmatpush2.bf16.msra.mxu0 0
    %846 = vmatprep.subr.bf16.mxu0 0
    %847 = vmatpush2.bf16.msra.mxu0 0
    %848 = vmatprep.subr.bf16.mxu0 0
    %849 = vmatpush2.bf16.msra.mxu0 0
    %850 = vmatprep.mubr.bf16.mxu0 0
    %851 = vmatmul.mubr.bf16.gmra.mxu0 %v813
    %v852 = vpop.f32.mrf.mxu0
    %v853 = vadd.f32 %v788, %v852
    %v854 = vpop.f32.mrf.mxu0
    %v855 = vpop.f32.mrf.mxu0
    %v856 = vadd.f32 %v792, %v855
    %v857 = vpop.f32.mrf.mxu0
    %858 = vmatprep.mubr.bf16.mxu0 0
    %859 = vmatmul.mubr.bf16.gmra.mxu0 %v816
    %v860 = vpop.f32.mrf.mxu0
    %v861 = vadd.f32 %v796, %v860
    %v862 = vpop.f32.mrf.mxu0
    %v863 = vpop.f32.mrf.mxu0
    %v864 = vadd.f32 %v800, %v863
    %v865 = vpop.f32.mrf.mxu0
    %866 = vdwg.mxu0
    %v867 = vmax.f32 %v853, 0.0
    %v868 = vmax.f32 %v856, 0.0
    %v869 = vmax.f32 %v861, 0.0
    %v870 = vmax.f32 %v864, 0.0
    %v871 = vpack.c.bf16 %v868, %v867
    %v872 = vpack.c.bf16 %v870, %v869
    %873 = vset.pattern.permute.xlu0 5
    %874 = vperm.xlu0 %873, %v57
    %v875 = vpop.permute.xlu0 %874
    %877 = vset.pattern.permute.xlu0 5
    %878 = vperm.xlu0 %877, %v58
    %v879 = vpop.permute.xlu0 %878
    %881 = vset.pattern.permute.xlu0 5
    %882 = vperm.xlu0 %881, %v59
    %v883 = vpop.permute.xlu0 %882
    %885 = vset.pattern.permute.xlu0 5
    %886 = vperm.xlu0 %885, %v60
    %v887 = vpop.permute.xlu0 %886
    %v893 = vunpack.c.l.b16 %v53
    %v894 = vunpack.c.l.b16 %v54
    %v895 = vunpack.c.l.b16 %v55
    %v896 = vunpack.c.l.b16 %v56
    %v897 = vpack.c.b16 %v894, %v893
    %v898 = vpack.c.b16 %v896, %v895
    %v900 = vsel %vm231, %v897, 0
    %v903 = vsel %vm231, %v898, 0
    %905 = vmatprep.subr.bf16.mxu0 0
    %906 = vmatpush1.bf16.msra.mxu0 0
    %907 = vmatprep.subr.bf16.mxu0 0
    %908 = vmatpush1.bf16.msra.mxu0 0
    %909 = vmatprep.subr.bf16.mxu0 0
    %910 = vmatpush1.bf16.msra.mxu0 0
    %911 = vmatprep.subr.bf16.mxu0 0
    %912 = vmatpush1.bf16.msra.mxu0 0
    %913 = vmatprep.subr.bf16.mxu0 0
    %914 = vmatpush1.bf16.msra.mxu0 0
    %915 = vmatprep.subr.bf16.mxu0 0
    %916 = vmatpush1.bf16.msra.mxu0 0
    %917 = vmatprep.subr.bf16.mxu0 0
    %918 = vmatpush1.bf16.msra.mxu0 %v872
    %919 = vmatprep.subr.bf16.mxu0 0
    %920 = vmatpush1.bf16.msra.mxu0 %v871
    %921 = vmatprep.subr.bf16.mxu0 0
    %922 = vmatpush2.bf16.msra.mxu0 0
    %923 = vmatprep.subr.bf16.mxu0 0
    %924 = vmatpush2.bf16.msra.mxu0 0
    %925 = vmatprep.subr.bf16.mxu0 0
    %926 = vmatpush2.bf16.msra.mxu0 0
    %927 = vmatprep.subr.bf16.mxu0 0
    %928 = vmatpush2.bf16.msra.mxu0 0
    %929 = vmatprep.subr.bf16.mxu0 0
    %930 = vmatpush2.bf16.msra.mxu0 0
    %931 = vmatprep.subr.bf16.mxu0 0
    %932 = vmatpush2.bf16.msra.mxu0 0
    %933 = vmatprep.subr.bf16.mxu0 0
    %934 = vmatpush2.bf16.msra.mxu0 0
    %935 = vmatprep.subr.bf16.mxu0 0
    %936 = vmatpush2.bf16.msra.mxu0 0
    %937 = vmatprep.mubr.bf16.mxu0 0
    %938 = vmatmul.mubr.bf16.gmra.mxu0 %v900
    %v939 = vpop.f32.mrf.mxu0
    %v940 = vadd.f32 %v875, %v939
    %v941 = vpop.f32.mrf.mxu0
    %v942 = vpop.f32.mrf.mxu0
    %v943 = vadd.f32 %v879, %v942
    %v944 = vpop.f32.mrf.mxu0
    %945 = vmatprep.mubr.bf16.mxu0 0
    %946 = vmatmul.mubr.bf16.gmra.mxu0 %v903
    %v947 = vpop.f32.mrf.mxu0
    %v948 = vadd.f32 %v883, %v947
    %v949 = vpop.f32.mrf.mxu0
    %v950 = vpop.f32.mrf.mxu0
    %v951 = vadd.f32 %v887, %v950
    %v952 = vpop.f32.mrf.mxu0
    %953 = vdwg.mxu0
    %v954 = vmax.f32 %v940, 0.0
    %v955 = vmax.f32 %v943, 0.0
    %v956 = vmax.f32 %v948, 0.0
    %v957 = vmax.f32 %v951, 0.0
    %v958 = vpack.c.bf16 %v955, %v954
    %v959 = vpack.c.bf16 %v957, %v956
    %v961 = vsel %vm231, %v67, 0
    %963 = vmatprep.subr.bf16.mxu0 0
    %964 = vmatpush1.bf16.msra.mxu0 0
    %965 = vmatprep.subr.bf16.mxu0 0
    %966 = vmatpush1.bf16.msra.mxu0 0
    %967 = vmatprep.subr.bf16.mxu0 0
    %968 = vmatpush1.bf16.msra.mxu0 0
    %969 = vmatprep.subr.bf16.mxu0 0
    %970 = vmatpush1.bf16.msra.mxu0 0
    %971 = vmatprep.subr.bf16.mxu0 0
    %972 = vmatpush1.bf16.msra.mxu0 0
    %973 = vmatprep.subr.bf16.mxu0 0
    %974 = vmatpush1.bf16.msra.mxu0 0
    %975 = vmatprep.subr.bf16.mxu0 0
    %976 = vmatpush1.bf16.msra.mxu0 %v959
    %977 = vmatprep.subr.bf16.mxu0 0
    %978 = vmatpush1.bf16.msra.mxu0 %v958
    %979 = vmatprep.subr.bf16.mxu0 0
    %980 = vmatpush2.bf16.msra.mxu0 0
    %981 = vmatprep.subr.bf16.mxu0 0
    %982 = vmatpush2.bf16.msra.mxu0 0
    %983 = vmatprep.subr.bf16.mxu0 0
    %984 = vmatpush2.bf16.msra.mxu0 0
    %985 = vmatprep.subr.bf16.mxu0 0
    %986 = vmatpush2.bf16.msra.mxu0 0
    %987 = vmatprep.subr.bf16.mxu0 0
    %988 = vmatpush2.bf16.msra.mxu0 0
    %989 = vmatprep.subr.bf16.mxu0 0
    %990 = vmatpush2.bf16.msra.mxu0 0
    %991 = vmatprep.subr.bf16.mxu0 0
    %992 = vmatpush2.bf16.msra.mxu0 0
    %993 = vmatprep.subr.bf16.mxu0 0
    %994 = vmatpush2.bf16.msra.mxu0 0
    %995 = vmatprep.mubr.bf16.mxu0 0
    %996 = vmatmul.mubr.bf16.gmra.mxu0 %v961
    %v997 = vpop.f32.mrf.mxu0
    %v998 = vadd.f32 0.0, %v997
    %v999 = vpop.f32.mrf.mxu0
    %v1000 = vpop.f32.mrf.mxu0
    %v1001 = vpop.f32.mrf.mxu0
    %1002 = vdwg.mxu0
    %v1003 = vadd.f32 %v734, %v998
    %v1004 = vpack.c.bf16 %v1003, %v1003
    %v1006 = vlaneseq
    %v1007 = vshrl.u32 %v1006, 7
    %v1008 = vsub.s32 0, %v1007
    %v1009 = vrot.slane %v89, %v1008
    %1011 = vmatprep.subr.bf16.mxu0 0
    %1012 = vmatpush1.bf16.xpose.msra.mxu0 0
    %1013 = vmatprep.subr.bf16.mxu0 0
    %1014 = vmatpush1.bf16.xpose.msra.mxu0 0
    %1015 = vmatprep.subr.bf16.mxu0 0
    %1016 = vmatpush1.bf16.xpose.msra.mxu0 0
    %1017 = vmatprep.subr.bf16.mxu0 0
    %1018 = vmatpush1.bf16.xpose.msra.mxu0 0
    %1019 = vmatprep.subr.bf16.mxu0 0
    %1020 = vmatpush1.bf16.xpose.msra.mxu0 0
    %1021 = vmatprep.subr.bf16.mxu0 0
    %1022 = vmatpush1.bf16.xpose.msra.mxu0 0
    %1023 = vmatprep.subr.bf16.mxu0 0
    %1024 = vmatpush1.bf16.xpose.msra.mxu0 0
    %1025 = vmatprep.subr.bf16.mxu0 0
    %1026 = vmatpush1.bf16.xpose.msra.mxu0 %v1004
    %1027 = vmatprep.subr.bf16.mxu0 0
    %1028 = vmatpush2.bf16.xpose.msra.mxu0 0
    %1029 = vmatprep.subr.bf16.mxu0 0
    %1030 = vmatpush2.bf16.xpose.msra.mxu0 0
    %1031 = vmatprep.subr.bf16.mxu0 0
    %1032 = vmatpush2.bf16.xpose.msra.mxu0 0
    %1033 = vmatprep.subr.bf16.mxu0 0
    %1034 = vmatpush2.bf16.xpose.msra.mxu0 0
    %1035 = vmatprep.subr.bf16.mxu0 0
    %1036 = vmatpush2.bf16.xpose.msra.mxu0 0
    %1037 = vmatprep.subr.bf16.mxu0 0
    %1038 = vmatpush2.bf16.xpose.msra.mxu0 0
    %1039 = vmatprep.subr.bf16.mxu0 0
    %1040 = vmatpush2.bf16.xpose.msra.mxu0 0
    %1041 = vmatprep.subr.bf16.mxu0 0
    %1042 = vmatpush2.bf16.xpose.msra.mxu0 0
    %1043 = vmatprep.mubr.bf16.mxu0 0
    %1044 = vmatmul.mubr.bf16.gmra.mxu0 %v88
    %v1045 = vpop.f32.mrf.mxu0
    %v1046 = vadd.f32 %v1009, %v1045
    %v1047 = vpop.f32.mrf.mxu0
    %v1048 = vpop.f32.mrf.mxu0
    %v1049 = vpop.f32.mrf.mxu0
    %1050 = vdwg.mxu0
    %vm1051 = vcmask 25600
    %v1052 = vsel %vm1051, %v1046, -inf
    %1053 = vmax.xlane.f32.xlu0 %v1052
    %v1054 = vpop.xlane.xlu0 %1053
    %v1055 = vsub.f32 %v1046, %v1054
    %v1056 = vmul.f32 %v1055, 1.442695
    %v1057 = vpow.pop %v1056
    %v1058 = vsel %vm1051, %v1057, 0.0
    %1059 = vadd.xlane.f32.xlu0 %v1058
    %v1060 = vpop.xlane.xlu0 %1059
    %v1061 = vlog2.pop %v1060
    %v1062 = vmul.f32 %v1061, 0.6931472
    %v1063 = vadd.f32 %v1054, %v1062
    %v1064 = vsub.f32 %v1046, %v1063
    %1065 = vst.msk [vmem:[#allocation2] sm:$0x3] %vm1051, %v1064
    // Predicated region
    $region30: #{drop_gin_forward.1} parent=1 // pred_check
      _
    $region31: #{drop_gin_forward.1} parent=1 // pred_check_branch
      %1067 = sbr.rel (0) target = $region33
    $region32: #{drop_gin_forward.1} parent=1 // pred_region
      %s1069 = ssub.s32 32, 32
      %1070 = vsyncadd [#allocation3], %s1069
      %s1072 = sshll.u32 [#allocation2], 4
      %s1073 = int_to_ptr.vmem [resolvable:$true] %s1072
      %1075 = dma.vmem_to_hbm [thread:$0]  %s1073, 32, %s7, [#allocation3]
    $region33: #{drop_gin_forward.1} parent=1 // pred_fallthru
      _
    // Predicated region
    $region34: #{drop_gin_forward.1} parent=1 // pred_check
      _
    $region35: #{drop_gin_forward.1} parent=1 // pred_check_branch
      %1077 = sbr.rel (0) target = $region37
    $region36: #{drop_gin_forward.1} parent=1 // pred_region
      %1078 = dma.done [#allocation3], 32
    $region37: #{drop_gin_forward.1} parent=1 // pred_fallthru
      _
    %1079 = vsyncpa [#allocation3], 1

</llo_original>
